<compile_context>
chip_gen: v5e
topology: v5e:2x2
jax: 0.10.0
libtpu: 0.0.40
codegen_flags: <defaults>
</compile_context>

<pallas_src>
import jax
import jax.numpy as jnp
from jax.experimental import pallas as pl
from jax.experimental.pallas import tpu as pltpu


def make_fcnet_kernel(nlayers):
    """Kernel for an MLP with `nlayers` Linear layers; ReLU after all but last."""

    def kernel(*refs):
        x_ref = refs[0]
        o_ref = refs[-1]
        wb = refs[1:-1]  # w_0, b_0, w_1, b_1, ..., interleaved
        h = x_ref[...]
        for l in range(nlayers):
            w = wb[2 * l][...]        # bf16 (dim_in, dim_out), VMEM-resident
            b = wb[2 * l + 1][...]    # f32  (1, dim_out)
            # MXU matmul with f32 accumulation; bias + ReLU on the VPU in f32.
            h = jnp.dot(h.astype(jnp.bfloat16), w,
                        preferred_element_type=jnp.float32) + b
            if l < nlayers - 1:
                h = jnp.maximum(h, 0.0)
        o_ref[...] = h.astype(o_ref.dtype)

    return kernel


def _round_up(n, m):
    return ((n + m - 1) // m) * m


def fcnet_forward(x, params, input_shape, *, max_batch_tile=256):
    """x: (B, C, H, W) float32. params: dict with lists 'ws', 'bs'. -> (B, C, H, W)."""
    B = x.shape[0]
    c, h, w = input_shape
    dim = c * h * w
    x_flat = x.reshape(B, dim)  # matches torch .view(x.shape[0], -1) on NCHW

    ws = [wi.astype(jnp.bfloat16) for wi in params["ws"]]  # bf16 weight storage
    bs = [bi.astype(jnp.float32) for bi in params["bs"]]   # biases stay f32
    nlayers = len(ws)

    # Batch tiling: pad to a multiple of 8 sublanes, tile up to max_batch_tile rows.
    tb = min(max_batch_tile, _round_up(B, 8))
    b_pad = _round_up(B, tb)
    if b_pad != B:
        x_flat = jnp.pad(x_flat, ((0, b_pad - B), (0, 0)))
    grid = (b_pad // tb,)

    # Interleaved weight/bias operands and their specs (constant block -> resident).
    wb_args = []
    wb_specs = []
    for wi, bi in zip(ws, bs):
        wb_args += [wi, bi]
        wb_specs += [
            pl.BlockSpec(wi.shape, lambda i: (0, 0)),  # weight: VMEM-resident
            pl.BlockSpec(bi.shape, lambda i: (0, 0)),  # bias:   VMEM-resident
        ]

    flops_per_row = 2 * sum(wi.shape[0] * wi.shape[1] for wi in ws)
    weight_bytes = 2 * sum(wi.shape[0] * wi.shape[1] for wi in ws)
    bias_bytes = 4 * sum(bi.shape[1] for bi in bs)
    cost = pl.CostEstimate(
        flops=b_pad * flops_per_row,
        transcendentals=0,
        bytes_accessed=weight_bytes + bias_bytes + 4 * b_pad * dim * 2,
    )

    y_flat = pl.pallas_call(
        make_fcnet_kernel(nlayers),
        out_shape=jax.ShapeDtypeStruct((b_pad, dim), x.dtype),
        grid=grid,
        in_specs=[pl.BlockSpec((tb, dim), lambda i: (i, 0))] + wb_specs,
        out_specs=pl.BlockSpec((tb, dim), lambda i: (i, 0)),
        compiler_params=pltpu.CompilerParams(
            dimension_semantics=("parallel",),
            vmem_limit_bytes=16 << 20,
        ),
        cost_estimate=cost,
    )(x_flat, *wb_args)

    return y_flat[:B].reshape(B, c, h, w)


def init_params(key, dim, idim, nhidden):
    """Deterministic init mimicking nn.Linear default (U[-1/sqrt(fan_in), +])."""
    sizes = []
    last = dim
    for _ in range(nhidden):
        sizes.append((last, idim))
        last = idim
    sizes.append((last, dim))

    ks = jax.random.split(key, 2 * len(sizes))
    ws, bs = [], []
    for li, (fan_in, fan_out) in enumerate(sizes):
        bound = 1.0 / jnp.sqrt(jnp.float32(fan_in))
        ws.append(jax.random.uniform(ks[2 * li], (fan_in, fan_out),
                                     jnp.float32, -bound, bound))
        bs.append(jax.random.uniform(ks[2 * li + 1], (1, fan_out),
                                     jnp.float32, -bound, bound))
    return {"ws": ws, "bs": bs}


def ref_forward_bf16(x_flat, params):
    """Same numerics as the kernel (bf16 MXU inputs, f32 accumulation)."""
    h = x_flat
    n = len(params["ws"])
    for l, (wi, bi) in enumerate(zip(params["ws"], params["bs"])):
        h = jnp.dot(h.astype(jnp.bfloat16), wi.astype(jnp.bfloat16),
                    preferred_element_type=jnp.float32) + bi
        if l < n - 1:
            h = jnp.maximum(h, 0.0)
    return h


def ref_forward_f32(x_flat, params):
    """Original module semantics (full f32 Linear layers)."""
    h = x_flat
    n = len(params["ws"])
    for l, (wi, bi) in enumerate(zip(params["ws"], params["bs"])):
        h = h @ wi + bi
        if l < n - 1:
            h = jnp.maximum(h, 0.0)
    return h


if __name__ == "__main__":
    # FCNet config: input_shape=(4,16,16) -> dim=1024, idim=128, nhidden=2,
    # lipschitz_layer=nn.Linear, activation='relu', preact=False, dropout=0.
    B = 2
    input_shape = (4, 16, 16)
    c, h, w = input_shape
    dim = c * h * w
    idim = 128
    nhidden = 2

    key = jax.random.PRNGKey(0)
    kx, kp = jax.random.split(key)
    x = jax.random.normal(kx, (B, c, h, w), jnp.float32)
    params = init_params(kp, dim, idim, nhidden)

    y = fcnet_forward(x, params, input_shape)
    y = jax.block_until_ready(y)
    assert y.shape == (B, c, h, w)

    xf = x.reshape(B, dim)
    # Tight check vs. a reference with identical bf16-weight numerics.
    ref_bf16 = ref_forward_bf16(xf, params).reshape(B, c, h, w)
    assert jnp.allclose(y, ref_bf16, atol=2e-3, rtol=2e-3)
    # Looser check vs. the original all-f32 module semantics.
    ref_f32 = ref_forward_f32(xf, params).reshape(B, c, h, w)
    assert jnp.allclose(y, ref_f32, atol=5e-2, rtol=5e-2)

    print("KERNEL_OK")
</pallas_src>

<mosaic_0001>
module attributes {stable_mosaic.version = 11 : i64} {
  func.func @kernel(%arg0: i32, %arg1: memref<8x1024xf32, #tpu.memory_space<vmem>>, %arg2: memref<1024x128xbf16, #tpu.memory_space<vmem>>, %arg3: memref<1x128xf32, #tpu.memory_space<vmem>>, %arg4: memref<128x128xbf16, #tpu.memory_space<vmem>>, %arg5: memref<1x128xf32, #tpu.memory_space<vmem>>, %arg6: memref<128x1024xbf16, #tpu.memory_space<vmem>>, %arg7: memref<1x1024xf32, #tpu.memory_space<vmem>>, %arg8: memref<8x1024xf32, #tpu.memory_space<vmem>>) attributes {dimension_semantics = [#tpu.dimension_semantics<parallel>], iteration_bounds = array<i64: 1>, scalar_prefetch = 0 : i64, scratch_operands = 0 : i64, tpu.core_type = #tpu.core_type<tc>, window_params = [{transform_indices = @transform_0, window_bounds = array<i64: 8, 1024>}, {pipeline_mode = #tpu.pipeline_mode<synchronous>, transform_indices = @transform_1, window_bounds = array<i64: 1024, 128>}, {pipeline_mode = #tpu.pipeline_mode<synchronous>, transform_indices = @transform_2, window_bounds = array<i64: 1, 128>}, {pipeline_mode = #tpu.pipeline_mode<synchronous>, transform_indices = @transform_3, window_bounds = array<i64: 128, 128>}, {pipeline_mode = #tpu.pipeline_mode<synchronous>, transform_indices = @transform_4, window_bounds = array<i64: 1, 128>}, {pipeline_mode = #tpu.pipeline_mode<synchronous>, transform_indices = @transform_5, window_bounds = array<i64: 128, 1024>}, {pipeline_mode = #tpu.pipeline_mode<synchronous>, transform_indices = @transform_6, window_bounds = array<i64: 1, 1024>}, {transform_indices = @transform_7, window_bounds = array<i64: 8, 1024>}]} {
    %c0 = arith.constant 0 : index
    %c0_0 = arith.constant 0 : index
    %0 = vector.load %arg1[%c0, %c0_0] : memref<8x1024xf32, #tpu.memory_space<vmem>>, vector<8x1024xf32>
    %c0_1 = arith.constant 0 : index
    %c0_2 = arith.constant 0 : index
    %1 = vector.load %arg2[%c0_1, %c0_2] : memref<1024x128xbf16, #tpu.memory_space<vmem>>, vector<1024x128xbf16>
    %c0_3 = arith.constant 0 : index
    %c0_4 = arith.constant 0 : index
    %2 = vector.load %arg3[%c0_3, %c0_4] : memref<1x128xf32, #tpu.memory_space<vmem>>, vector<1x128xf32>
    %3 = arith.truncf %0 : vector<8x1024xf32> to vector<8x1024xbf16>
    %cst = arith.constant dense<0.000000e+00> : vector<8x128xf32>
    %4 = tpu.matmul %3, %1, %cst {dimension_numbers = #tpu.dot_dimension_numbers<[1], [0], [0], [1], [0, 0, 1, 1], [], []>} : vector<8x1024xbf16>, vector<1024x128xbf16>, vector<8x128xf32> -> vector<8x128xf32>
    %5 = vector.broadcast %2 : vector<1x128xf32> to vector<8x128xf32>
    %6 = arith.addf %4, %5 : vector<8x128xf32>
    %cst_5 = arith.constant 0.000000e+00 : f32
    %7 = vector.broadcast %cst_5 : f32 to vector<8x128xf32>
    %8 = arith.maximumf %6, %7 : vector<8x128xf32>
    %c0_6 = arith.constant 0 : index
    %c0_7 = arith.constant 0 : index
    %9 = vector.load %arg4[%c0_6, %c0_7] : memref<128x128xbf16, #tpu.memory_space<vmem>>, vector<128x128xbf16>
    %c0_8 = arith.constant 0 : index
    %c0_9 = arith.constant 0 : index
    %10 = vector.load %arg5[%c0_8, %c0_9] : memref<1x128xf32, #tpu.memory_space<vmem>>, vector<1x128xf32>
    %11 = arith.truncf %8 : vector<8x128xf32> to vector<8x128xbf16>
    %cst_10 = arith.constant dense<0.000000e+00> : vector<8x128xf32>
    %12 = tpu.matmul %11, %9, %cst_10 {dimension_numbers = #tpu.dot_dimension_numbers<[1], [0], [0], [1], [0, 0, 1, 1], [], []>} : vector<8x128xbf16>, vector<128x128xbf16>, vector<8x128xf32> -> vector<8x128xf32>
    %13 = vector.broadcast %10 : vector<1x128xf32> to vector<8x128xf32>
    %14 = arith.addf %12, %13 : vector<8x128xf32>
    %cst_11 = arith.constant 0.000000e+00 : f32
    %15 = vector.broadcast %cst_11 : f32 to vector<8x128xf32>
    %16 = arith.maximumf %14, %15 : vector<8x128xf32>
    %c0_12 = arith.constant 0 : index
    %c0_13 = arith.constant 0 : index
    %17 = vector.load %arg6[%c0_12, %c0_13] : memref<128x1024xbf16, #tpu.memory_space<vmem>>, vector<128x1024xbf16>
    %c0_14 = arith.constant 0 : index
    %c0_15 = arith.constant 0 : index
    %18 = vector.load %arg7[%c0_14, %c0_15] : memref<1x1024xf32, #tpu.memory_space<vmem>>, vector<1x1024xf32>
    %19 = arith.truncf %16 : vector<8x128xf32> to vector<8x128xbf16>
    %cst_16 = arith.constant dense<0.000000e+00> : vector<8x1024xf32>
    %20 = tpu.matmul %19, %17, %cst_16 {dimension_numbers = #tpu.dot_dimension_numbers<[1], [0], [0], [1], [0, 0, 1, 1], [], []>} : vector<8x128xbf16>, vector<128x1024xbf16>, vector<8x1024xf32> -> vector<8x1024xf32>
    %21 = vector.broadcast %18 : vector<1x1024xf32> to vector<8x1024xf32>
    %22 = arith.addf %20, %21 : vector<8x1024xf32>
    %c0_17 = arith.constant 0 : index
    %c0_18 = arith.constant 0 : index
    %23 = vector.load %arg8[%c0_17, %c0_18] : memref<8x1024xf32, #tpu.memory_space<vmem>>, vector<8x1024xf32>
    tpu.vector_store %arg8[%c0_17, %c0_18], %22 {strides = array<i32>} : memref<8x1024xf32, #tpu.memory_space<vmem>>, vector<8x1024xf32>,
    return
  }
  func.func @transform_0(%arg0: i32) -> (i32, i32) {
    %c0_i32 = arith.constant 0 : i32
    %c0_i32_0 = arith.constant 0 : i32
    return %arg0, %c0_i32 : i32, i32
  }
  func.func @transform_1(%arg0: i32) -> (i32, i32) {
    %c0_i32 = arith.constant 0 : i32
    %c0_i32_0 = arith.constant 0 : i32
    %c0_i32_1 = arith.constant 0 : i32
    return %c0_i32, %c0_i32_0 : i32, i32
  }
  func.func @transform_2(%arg0: i32) -> (i32, i32) {
    %c0_i32 = arith.constant 0 : i32
    %c0_i32_0 = arith.constant 0 : i32
    %c0_i32_1 = arith.constant 0 : i32
    return %c0_i32, %c0_i32_0 : i32, i32
  }
  func.func @transform_3(%arg0: i32) -> (i32, i32) {
    %c0_i32 = arith.constant 0 : i32
    %c0_i32_0 = arith.constant 0 : i32
    %c0_i32_1 = arith.constant 0 : i32
    return %c0_i32, %c0_i32_0 : i32, i32
  }
  func.func @transform_4(%arg0: i32) -> (i32, i32) {
    %c0_i32 = arith.constant 0 : i32
    %c0_i32_0 = arith.constant 0 : i32
    %c0_i32_1 = arith.constant 0 : i32
    return %c0_i32, %c0_i32_0 : i32, i32
  }
  func.func @transform_5(%arg0: i32) -> (i32, i32) {
    %c0_i32 = arith.constant 0 : i32
    %c0_i32_0 = arith.constant 0 : i32
    %c0_i32_1 = arith.constant 0 : i32
    return %c0_i32, %c0_i32_0 : i32, i32
  }
  func.func @transform_6(%arg0: i32) -> (i32, i32) {
    %c0_i32 = arith.constant 0 : i32
    %c0_i32_0 = arith.constant 0 : i32
    %c0_i32_1 = arith.constant 0 : i32
    return %c0_i32, %c0_i32_0 : i32, i32
  }
  func.func @transform_7(%arg0: i32) -> (i32, i32) {
    %c0_i32 = arith.constant 0 : i32
    %c0_i32_0 = arith.constant 0 : i32
    return %arg0, %c0_i32 : i32, i32
  }
}

</mosaic_0001>

<llo_original>
// kernel: tpu_custom_call.1
$region0: #{tpu_custom_call.1}
  #allocation0 [shape = 'u32[]', space=smem, size = 0x4, offset = 0x4, fixed_abs, tag = 'smem constant byte address 0x4 - core index']
  #allocation1 [shape = 'u32[72,128]{1,0:T(1,128)}', space=vmem, size = 0x9000, scoped, tag = 'internal scratch']
  %s0 = inlined_call_operand.hbm [shape: f32[8,1024], index: 0, kind: input, shape index: {}]
  %s1 = inlined_call_operand.hbm [shape: bf16[1024,128], index: 1, kind: input, shape index: {}]
  %s2 = inlined_call_operand.vmem [shape: f32[1,128], index: 2, kind: input, shape index: {}]
  %s3 = inlined_call_operand.hbm [shape: bf16[128,128], index: 3, kind: input, shape index: {}]
  %s4 = inlined_call_operand.vmem [shape: f32[1,128], index: 4, kind: input, shape index: {}]
  %s5 = inlined_call_operand.hbm [shape: bf16[128,1024], index: 5, kind: input, shape index: {}]
  %s6 = inlined_call_operand.hbm [shape: f32[1,1024], index: 6, kind: input, shape index: {}]
  %s7 = inlined_call_operand.hbm [shape: f32[8,1024], index: 7, kind: output, shape index: {}]
  %s8 = sld [smem:[#allocation0]]
  $region58: #{tpu_custom_call.1} parent=0
    _
  %s10 = ssub.s32 1, %s8
  %s11 = scalar_select 0, %s10, %s8
  $region1: #{tpu_custom_call.1} parent=0
    #allocation2 [shape = 'u8[32768]{0}', space=vmem, size = 0x8000, scoped, tag = 'input window, operand 0, single buffered']
    #allocation3 [shape = 's32[1]{0}', space=sflag, size = 0x4, scoped, tag = 'scoped memory for tpu_custom_call.1']
    #allocation4 [shape = 's32[1]{0}', space=sflag, size = 0x4, scoped, tag = 'scoped memory for tpu_custom_call.1']
    #allocation5 [shape = 'u8[262144]{0}', space=vmem, size = 0x40000, scoped, tag = 'input window, operand 1, single buffered']
    #allocation6 [shape = 's32[1]{0}', space=sflag, size = 0x4, scoped, tag = 'scoped memory for tpu_custom_call.1']
    #allocation7 [shape = 'u8[32768]{0}', space=vmem, size = 0x8000, scoped, tag = 'input window, operand 3, single buffered']
    #allocation8 [shape = 'u8[262144]{0}', space=vmem, size = 0x40000, scoped, tag = 'input window, operand 5, single buffered']
    #allocation9 [shape = 's32[1]{0}', space=sflag, size = 0x4, scoped, tag = 'scoped memory for tpu_custom_call.1']
    #allocation10 [shape = 'u8[4096]{0}', space=vmem, size = 0x1000, scoped, tag = 'input window, operand 6, single buffered']
    #allocation11 [shape = 'u8[32768]{0}', space=vmem, size = 0x8000, scoped, tag = 'output window, operand 0, single buffered']
    %12 = vsyncpa [#allocation3], 0
    %13 = vsyncpa [#allocation6], 0
    %14 = vsyncpa [#allocation9], 0
    %15 = vsyncpa [#allocation4], 0
    // Predicated region
    $region2: #{tpu_custom_call.1} parent=1 // pred_check
      _
    $region3: #{tpu_custom_call.1} parent=1 // pred_check_branch
      %17 = sbr.rel (0) target = $region5
    $region4: #{tpu_custom_call.1} parent=1 // pred_region
      %19 = vsyncadd [#allocation3], 0
      %s21 = sshll.u32 %s0, 4
      %s22 = int_to_ptr.hbm [resolvable:$true] %s21
      %s23 = sshll.u32 [#allocation2], 4
      %s24 = int_to_ptr.vmem [resolvable:$true] %s23
      %26 = dma.hbm_to_vmem [thread:$0]  %s22, 1024, %s24, [#allocation3]
    $region5: #{tpu_custom_call.1} parent=1 // pred_fallthru
      _
    // Predicated region
    $region6: #{tpu_custom_call.1} parent=1 // pred_check
      _
    $region7: #{tpu_custom_call.1} parent=1 // pred_check_branch
      %28 = sbr.rel (0) target = $region9
    $region8: #{tpu_custom_call.1} parent=1 // pred_region
      %30 = vsyncadd [#allocation6], 0
      %s31 = sshll.u32 %s1, 4
      %s32 = int_to_ptr.hbm [resolvable:$true] %s31
      %s33 = sshll.u32 [#allocation5], 4
      %s34 = int_to_ptr.vmem [resolvable:$true] %s33
      %39 = dma.hbm_to_vmem [thread:$0]  %s32, 8192, %s34, [#allocation6], 64, 64, 4
    $region9: #{tpu_custom_call.1} parent=1 // pred_fallthru
      _
    // Predicated region
    $region10: #{tpu_custom_call.1} parent=1 // pred_check
      _
    $region11: #{tpu_custom_call.1} parent=1 // pred_check_branch
      %41 = sbr.rel (0) target = $region13
    $region12: #{tpu_custom_call.1} parent=1 // pred_region
      _
    $region13: #{tpu_custom_call.1} parent=1 // pred_fallthru
      _
    // Predicated region
    $region14: #{tpu_custom_call.1} parent=1 // pred_check
      _
    $region15: #{tpu_custom_call.1} parent=1 // pred_check_branch
      %43 = sbr.rel (0) target = $region17
    $region16: #{tpu_custom_call.1} parent=1 // pred_region
      %45 = vsyncadd [#allocation6], 0
      %s46 = sshll.u32 %s3, 4
      %s47 = int_to_ptr.hbm [resolvable:$true] %s46
      %s48 = sshll.u32 [#allocation7], 4
      %s49 = int_to_ptr.vmem [resolvable:$true] %s48
      %54 = dma.hbm_to_vmem [thread:$0]  %s47, 1024, %s49, [#allocation6], 64, 64, 4
    $region17: #{tpu_custom_call.1} parent=1 // pred_fallthru
      _
    // Predicated region
    $region18: #{tpu_custom_call.1} parent=1 // pred_check
      _
    $region19: #{tpu_custom_call.1} parent=1 // pred_check_branch
      %56 = sbr.rel (0) target = $region21
    $region20: #{tpu_custom_call.1} parent=1 // pred_region
      _
    $region21: #{tpu_custom_call.1} parent=1 // pred_fallthru
      _
    // Predicated region
    $region22: #{tpu_custom_call.1} parent=1 // pred_check
      _
    $region23: #{tpu_custom_call.1} parent=1 // pred_check_branch
      %58 = sbr.rel (0) target = $region25
    $region24: #{tpu_custom_call.1} parent=1 // pred_region
      %60 = vsyncadd [#allocation9], 0
      %s61 = sshll.u32 %s5, 4
      %s62 = int_to_ptr.hbm [resolvable:$true] %s61
      %s63 = sshll.u32 [#allocation8], 4
      %s64 = int_to_ptr.vmem [resolvable:$true] %s63
      %69 = dma.hbm_to_vmem [thread:$0]  %s62, 8192, %s64, [#allocation9], 512, 512, 32
    $region25: #{tpu_custom_call.1} parent=1 // pred_fallthru
      _
    // Predicated region
    $region26: #{tpu_custom_call.1} parent=1 // pred_check
      _
    $region27: #{tpu_custom_call.1} parent=1 // pred_check_branch
      %71 = sbr.rel (0) target = $region29
    $region28: #{tpu_custom_call.1} parent=1 // pred_region
      %73 = vsyncadd [#allocation9], 0
      %s75 = sshll.u32 %s6, 4
      %s76 = int_to_ptr.hbm [resolvable:$true] %s75
      %s77 = sshll.u32 [#allocation10], 4
      %s78 = int_to_ptr.vmem [resolvable:$true] %s77
      %80 = dma.hbm_to_vmem [thread:$0]  %s76, 128, %s78, [#allocation9]
    $region29: #{tpu_custom_call.1} parent=1 // pred_fallthru
      _
    // Predicated region
    $region30: #{tpu_custom_call.1} parent=1 // pred_check
      _
    $region31: #{tpu_custom_call.1} parent=1 // pred_check_branch
      %82 = sbr.rel (0) target = $region33
    $region32: #{tpu_custom_call.1} parent=1 // pred_region
      %84 = dma.done [#allocation3], 1024
    $region33: #{tpu_custom_call.1} parent=1 // pred_fallthru
      _
    // Predicated region
    $region34: #{tpu_custom_call.1} parent=1 // pred_check
      _
    $region35: #{tpu_custom_call.1} parent=1 // pred_check_branch
      %86 = sbr.rel (0) target = $region37
    $region36: #{tpu_custom_call.1} parent=1 // pred_region
      %88 = dma.done [#allocation6], 8192
    $region37: #{tpu_custom_call.1} parent=1 // pred_fallthru
      _
    // Predicated region
    $region38: #{tpu_custom_call.1} parent=1 // pred_check
      _
    $region39: #{tpu_custom_call.1} parent=1 // pred_check_branch
      %90 = sbr.rel (0) target = $region41
    $region40: #{tpu_custom_call.1} parent=1 // pred_region
      %92 = dma.done [#allocation6], 1024
    $region41: #{tpu_custom_call.1} parent=1 // pred_fallthru
      _
    // Predicated region
    $region42: #{tpu_custom_call.1} parent=1 // pred_check
      _
    $region43: #{tpu_custom_call.1} parent=1 // pred_check_branch
      %94 = sbr.rel (0) target = $region45
    $region44: #{tpu_custom_call.1} parent=1 // pred_region
      %96 = dma.done [#allocation9], 8192
    $region45: #{tpu_custom_call.1} parent=1 // pred_fallthru
      _
    // Predicated region
    $region46: #{tpu_custom_call.1} parent=1 // pred_check
      _
    $region47: #{tpu_custom_call.1} parent=1 // pred_check_branch
      %98 = sbr.rel (0) target = $region49
    $region48: #{tpu_custom_call.1} parent=1 // pred_region
      %100 = dma.done [#allocation9], 128
    $region49: #{tpu_custom_call.1} parent=1 // pred_fallthru
      _
    %v101 = vld [vmem:[#allocation2] sm:$0xff]
    %v102 = vld [vmem:[#allocation2 + $0x8] sm:$0xff]
    %v103 = vld [vmem:[#allocation2 + $0x10] sm:$0xff]
    %v104 = vld [vmem:[#allocation2 + $0x18] sm:$0xff]
    %v105 = vld [vmem:[#allocation2 + $0x20] sm:$0xff]
    %v106 = vld [vmem:[#allocation2 + $0x28] sm:$0xff]
    %v107 = vld [vmem:[#allocation2 + $0x30] sm:$0xff]
    %v108 = vld [vmem:[#allocation2 + $0x38] sm:$0xff]
    %v109 = vld [vmem:[#allocation5] sm:$0xf]
    %v110 = vld [vmem:[#allocation5 + $0x4] sm:$0xf]
    %v111 = vld [vmem:[#allocation5 + $0x8] sm:$0xf]
    %v112 = vld [vmem:[#allocation5 + $0xc] sm:$0xf]
    %v113 = vld [vmem:[#allocation5 + $0x10] sm:$0xf]
    %v114 = vld [vmem:[#allocation5 + $0x14] sm:$0xf]
    %v115 = vld [vmem:[#allocation5 + $0x18] sm:$0xf]
    %v116 = vld [vmem:[#allocation5 + $0x1c] sm:$0xf]
    %v117 = vld [vmem:[#allocation5 + $0x20] sm:$0xf]
    %v118 = vld [vmem:[#allocation5 + $0x24] sm:$0xf]
    %v119 = vld [vmem:[#allocation5 + $0x28] sm:$0xf]
    %v120 = vld [vmem:[#allocation5 + $0x2c] sm:$0xf]
    %v121 = vld [vmem:[#allocation5 + $0x30] sm:$0xf]
    %v122 = vld [vmem:[#allocation5 + $0x34] sm:$0xf]
    %v123 = vld [vmem:[#allocation5 + $0x38] sm:$0xf]
    %v124 = vld [vmem:[#allocation5 + $0x3c] sm:$0xf]
    %v125 = vld [vmem:[#allocation5 + $0x40] sm:$0xf]
    %v126 = vld [vmem:[#allocation5 + $0x44] sm:$0xf]
    %v127 = vld [vmem:[#allocation5 + $0x48] sm:$0xf]
    %v128 = vld [vmem:[#allocation5 + $0x4c] sm:$0xf]
    %v129 = vld [vmem:[#allocation5 + $0x50] sm:$0xf]
    %v130 = vld [vmem:[#allocation5 + $0x54] sm:$0xf]
    %v131 = vld [vmem:[#allocation5 + $0x58] sm:$0xf]
    %v132 = vld [vmem:[#allocation5 + $0x5c] sm:$0xf]
    %v133 = vld [vmem:[#allocation5 + $0x60] sm:$0xf]
    %v134 = vld [vmem:[#allocation5 + $0x64] sm:$0xf]
    %v135 = vld [vmem:[#allocation5 + $0x68] sm:$0xf]
    %v136 = vld [vmem:[#allocation5 + $0x6c] sm:$0xf]
    %v137 = vld [vmem:[#allocation5 + $0x70] sm:$0xf]
    %v138 = vld [vmem:[#allocation5 + $0x74] sm:$0xf]
    %v139 = vld [vmem:[#allocation5 + $0x78] sm:$0xf]
    %v140 = vld [vmem:[#allocation5 + $0x7c] sm:$0xf]
    %v141 = vld [vmem:[#allocation5 + $0x80] sm:$0xf]
    %v142 = vld [vmem:[#allocation5 + $0x84] sm:$0xf]
    %v143 = vld [vmem:[#allocation5 + $0x88] sm:$0xf]
    %v144 = vld [vmem:[#allocation5 + $0x8c] sm:$0xf]
    %v145 = vld [vmem:[#allocation5 + $0x90] sm:$0xf]
    %v146 = vld [vmem:[#allocation5 + $0x94] sm:$0xf]
    %v147 = vld [vmem:[#allocation5 + $0x98] sm:$0xf]
    %v148 = vld [vmem:[#allocation5 + $0x9c] sm:$0xf]
    %v149 = vld [vmem:[#allocation5 + $0xa0] sm:$0xf]
    %v150 = vld [vmem:[#allocation5 + $0xa4] sm:$0xf]
    %v151 = vld [vmem:[#allocation5 + $0xa8] sm:$0xf]
    %v152 = vld [vmem:[#allocation5 + $0xac] sm:$0xf]
    %v153 = vld [vmem:[#allocation5 + $0xb0] sm:$0xf]
    %v154 = vld [vmem:[#allocation5 + $0xb4] sm:$0xf]
    %v155 = vld [vmem:[#allocation5 + $0xb8] sm:$0xf]
    %v156 = vld [vmem:[#allocation5 + $0xbc] sm:$0xf]
    %v157 = vld [vmem:[#allocation5 + $0xc0] sm:$0xf]
    %v158 = vld [vmem:[#allocation5 + $0xc4] sm:$0xf]
    %v159 = vld [vmem:[#allocation5 + $0xc8] sm:$0xf]
    %v160 = vld [vmem:[#allocation5 + $0xcc] sm:$0xf]
    %v161 = vld [vmem:[#allocation5 + $0xd0] sm:$0xf]
    %v162 = vld [vmem:[#allocation5 + $0xd4] sm:$0xf]
    %v163 = vld [vmem:[#allocation5 + $0xd8] sm:$0xf]
    %v164 = vld [vmem:[#allocation5 + $0xdc] sm:$0xf]
    %v165 = vld [vmem:[#allocation5 + $0xe0] sm:$0xf]
    %v166 = vld [vmem:[#allocation5 + $0xe4] sm:$0xf]
    %v167 = vld [vmem:[#allocation5 + $0xe8] sm:$0xf]
    %v168 = vld [vmem:[#allocation5 + $0xec] sm:$0xf]
    %v169 = vld [vmem:[#allocation5 + $0xf0] sm:$0xf]
    %v170 = vld [vmem:[#allocation5 + $0xf4] sm:$0xf]
    %v171 = vld [vmem:[#allocation5 + $0xf8] sm:$0xf]
    %v172 = vld [vmem:[#allocation5 + $0xfc] sm:$0xf]
    %v173 = vld [vmem:[#allocation5 + $0x100] sm:$0xf]
    %v174 = vld [vmem:[#allocation5 + $0x104] sm:$0xf]
    %v175 = vld [vmem:[#allocation5 + $0x108] sm:$0xf]
    %v176 = vld [vmem:[#allocation5 + $0x10c] sm:$0xf]
    %v177 = vld [vmem:[#allocation5 + $0x110] sm:$0xf]
    %v178 = vld [vmem:[#allocation5 + $0x114] sm:$0xf]
    %v179 = vld [vmem:[#allocation5 + $0x118] sm:$0xf]
    %v180 = vld [vmem:[#allocation5 + $0x11c] sm:$0xf]
    %v181 = vld [vmem:[#allocation5 + $0x120] sm:$0xf]
    %v182 = vld [vmem:[#allocation5 + $0x124] sm:$0xf]
    %v183 = vld [vmem:[#allocation5 + $0x128] sm:$0xf]
    %v184 = vld [vmem:[#allocation5 + $0x12c] sm:$0xf]
    %v185 = vld [vmem:[#allocation5 + $0x130] sm:$0xf]
    %v186 = vld [vmem:[#allocation5 + $0x134] sm:$0xf]
    %v187 = vld [vmem:[#allocation5 + $0x138] sm:$0xf]
    %v188 = vld [vmem:[#allocation5 + $0x13c] sm:$0xf]
    %v189 = vld [vmem:[#allocation5 + $0x140] sm:$0xf]
    %v190 = vld [vmem:[#allocation5 + $0x144] sm:$0xf]
    %v191 = vld [vmem:[#allocation5 + $0x148] sm:$0xf]
    %v192 = vld [vmem:[#allocation5 + $0x14c] sm:$0xf]
    %v193 = vld [vmem:[#allocation5 + $0x150] sm:$0xf]
    %v194 = vld [vmem:[#allocation5 + $0x154] sm:$0xf]
    %v195 = vld [vmem:[#allocation5 + $0x158] sm:$0xf]
    %v196 = vld [vmem:[#allocation5 + $0x15c] sm:$0xf]
    %v197 = vld [vmem:[#allocation5 + $0x160] sm:$0xf]
    %v198 = vld [vmem:[#allocation5 + $0x164] sm:$0xf]
    %v199 = vld [vmem:[#allocation5 + $0x168] sm:$0xf]
    %v200 = vld [vmem:[#allocation5 + $0x16c] sm:$0xf]
    %v201 = vld [vmem:[#allocation5 + $0x170] sm:$0xf]
    %v202 = vld [vmem:[#allocation5 + $0x174] sm:$0xf]
    %v203 = vld [vmem:[#allocation5 + $0x178] sm:$0xf]
    %v204 = vld [vmem:[#allocation5 + $0x17c] sm:$0xf]
    %v205 = vld [vmem:[#allocation5 + $0x180] sm:$0xf]
    %v206 = vld [vmem:[#allocation5 + $0x184] sm:$0xf]
    %v207 = vld [vmem:[#allocation5 + $0x188] sm:$0xf]
    %v208 = vld [vmem:[#allocation5 + $0x18c] sm:$0xf]
    %v209 = vld [vmem:[#allocation5 + $0x190] sm:$0xf]
    %v210 = vld [vmem:[#allocation5 + $0x194] sm:$0xf]
    %v211 = vld [vmem:[#allocation5 + $0x198] sm:$0xf]
    %v212 = vld [vmem:[#allocation5 + $0x19c] sm:$0xf]
    %v213 = vld [vmem:[#allocation5 + $0x1a0] sm:$0xf]
    %v214 = vld [vmem:[#allocation5 + $0x1a4] sm:$0xf]
    %v215 = vld [vmem:[#allocation5 + $0x1a8] sm:$0xf]
    %v216 = vld [vmem:[#allocation5 + $0x1ac] sm:$0xf]
    %v217 = vld [vmem:[#allocation5 + $0x1b0] sm:$0xf]
    %v218 = vld [vmem:[#allocation5 + $0x1b4] sm:$0xf]
    %v219 = vld [vmem:[#allocation5 + $0x1b8] sm:$0xf]
    %v220 = vld [vmem:[#allocation5 + $0x1bc] sm:$0xf]
    %v221 = vld [vmem:[#allocation5 + $0x1c0] sm:$0xf]
    %v222 = vld [vmem:[#allocation5 + $0x1c4] sm:$0xf]
    %v223 = vld [vmem:[#allocation5 + $0x1c8] sm:$0xf]
    %v224 = vld [vmem:[#allocation5 + $0x1cc] sm:$0xf]
    %v225 = vld [vmem:[#allocation5 + $0x1d0] sm:$0xf]
    %v226 = vld [vmem:[#allocation5 + $0x1d4] sm:$0xf]
    %v227 = vld [vmem:[#allocation5 + $0x1d8] sm:$0xf]
    %v228 = vld [vmem:[#allocation5 + $0x1dc] sm:$0xf]
    %v229 = vld [vmem:[#allocation5 + $0x1e0] sm:$0xf]
    %v230 = vld [vmem:[#allocation5 + $0x1e4] sm:$0xf]
    %v231 = vld [vmem:[#allocation5 + $0x1e8] sm:$0xf]
    %v232 = vld [vmem:[#allocation5 + $0x1ec] sm:$0xf]
    %v233 = vld [vmem:[#allocation5 + $0x1f0] sm:$0xf]
    %v234 = vld [vmem:[#allocation5 + $0x1f4] sm:$0xf]
    %v235 = vld [vmem:[#allocation5 + $0x1f8] sm:$0xf]
    %v236 = vld [vmem:[#allocation5 + $0x1fc] sm:$0xf]
    %v237 = vld [vmem:[%s2] sm:$0x1]
    %v238 = vpack.c.bf16 %v101, %v101
    %v239 = vpack.c.bf16 %v102, %v102
    %v240 = vpack.c.bf16 %v103, %v103
    %v241 = vpack.c.bf16 %v104, %v104
    %v242 = vpack.c.bf16 %v105, %v105
    %v243 = vpack.c.bf16 %v106, %v106
    %v244 = vpack.c.bf16 %v107, %v107
    %v245 = vpack.c.bf16 %v108, %v108
    %v247 = vperm.slane %v237, 0
    %v377 = vunpack.c.l.b16 %v109
    %v378 = vunpack.c.l.b16 %v110
    %v379 = vunpack.c.l.b16 %v111
    %v380 = vunpack.c.l.b16 %v112
    %v381 = vunpack.c.l.b16 %v113
    %v382 = vunpack.c.l.b16 %v114
    %v383 = vunpack.c.l.b16 %v115
    %v384 = vunpack.c.l.b16 %v116
    %v385 = vunpack.c.l.b16 %v117
    %v386 = vunpack.c.l.b16 %v118
    %v387 = vunpack.c.l.b16 %v119
    %v388 = vunpack.c.l.b16 %v120
    %v389 = vunpack.c.l.b16 %v121
    %v390 = vunpack.c.l.b16 %v122
    %v391 = vunpack.c.l.b16 %v123
    %v392 = vunpack.c.l.b16 %v124
    %v393 = vunpack.c.l.b16 %v125
    %v394 = vunpack.c.l.b16 %v126
    %v395 = vunpack.c.l.b16 %v127
    %v396 = vunpack.c.l.b16 %v128
    %v397 = vunpack.c.l.b16 %v129
    %v398 = vunpack.c.l.b16 %v130
    %v399 = vunpack.c.l.b16 %v131
    %v400 = vunpack.c.l.b16 %v132
    %v401 = vunpack.c.l.b16 %v133
    %v402 = vunpack.c.l.b16 %v134
    %v403 = vunpack.c.l.b16 %v135
    %v404 = vunpack.c.l.b16 %v136
    %v405 = vunpack.c.l.b16 %v137
    %v406 = vunpack.c.l.b16 %v138
    %v407 = vunpack.c.l.b16 %v139
    %v408 = vunpack.c.l.b16 %v140
    %v409 = vunpack.c.l.b16 %v141
    %v410 = vunpack.c.l.b16 %v142
    %v411 = vunpack.c.l.b16 %v143
    %v412 = vunpack.c.l.b16 %v144
    %v413 = vunpack.c.l.b16 %v145
    %v414 = vunpack.c.l.b16 %v146
    %v415 = vunpack.c.l.b16 %v147
    %v416 = vunpack.c.l.b16 %v148
    %v417 = vunpack.c.l.b16 %v149
    %v418 = vunpack.c.l.b16 %v150
    %v419 = vunpack.c.l.b16 %v151
    %v420 = vunpack.c.l.b16 %v152
    %v421 = vunpack.c.l.b16 %v153
    %v422 = vunpack.c.l.b16 %v154
    %v423 = vunpack.c.l.b16 %v155
    %v424 = vunpack.c.l.b16 %v156
    %v425 = vunpack.c.l.b16 %v157
    %v426 = vunpack.c.l.b16 %v158
    %v427 = vunpack.c.l.b16 %v159
    %v428 = vunpack.c.l.b16 %v160
    %v429 = vunpack.c.l.b16 %v161
    %v430 = vunpack.c.l.b16 %v162
    %v431 = vunpack.c.l.b16 %v163
    %v432 = vunpack.c.l.b16 %v164
    %v433 = vunpack.c.l.b16 %v165
    %v434 = vunpack.c.l.b16 %v166
    %v435 = vunpack.c.l.b16 %v167
    %v436 = vunpack.c.l.b16 %v168
    %v437 = vunpack.c.l.b16 %v169
    %v438 = vunpack.c.l.b16 %v170
    %v439 = vunpack.c.l.b16 %v171
    %v440 = vunpack.c.l.b16 %v172
    %v441 = vunpack.c.l.b16 %v173
    %v442 = vunpack.c.l.b16 %v174
    %v443 = vunpack.c.l.b16 %v175
    %v444 = vunpack.c.l.b16 %v176
    %v445 = vunpack.c.l.b16 %v177
    %v446 = vunpack.c.l.b16 %v178
    %v447 = vunpack.c.l.b16 %v179
    %v448 = vunpack.c.l.b16 %v180
    %v449 = vunpack.c.l.b16 %v181
    %v450 = vunpack.c.l.b16 %v182
    %v451 = vunpack.c.l.b16 %v183
    %v452 = vunpack.c.l.b16 %v184
    %v453 = vunpack.c.l.b16 %v185
    %v454 = vunpack.c.l.b16 %v186
    %v455 = vunpack.c.l.b16 %v187
    %v456 = vunpack.c.l.b16 %v188
    %v457 = vunpack.c.l.b16 %v189
    %v458 = vunpack.c.l.b16 %v190
    %v459 = vunpack.c.l.b16 %v191
    %v460 = vunpack.c.l.b16 %v192
    %v461 = vunpack.c.l.b16 %v193
    %v462 = vunpack.c.l.b16 %v194
    %v463 = vunpack.c.l.b16 %v195
    %v464 = vunpack.c.l.b16 %v196
    %v465 = vunpack.c.l.b16 %v197
    %v466 = vunpack.c.l.b16 %v198
    %v467 = vunpack.c.l.b16 %v199
    %v468 = vunpack.c.l.b16 %v200
    %v469 = vunpack.c.l.b16 %v201
    %v470 = vunpack.c.l.b16 %v202
    %v471 = vunpack.c.l.b16 %v203
    %v472 = vunpack.c.l.b16 %v204
    %v473 = vunpack.c.l.b16 %v205
    %v474 = vunpack.c.l.b16 %v206
    %v475 = vunpack.c.l.b16 %v207
    %v476 = vunpack.c.l.b16 %v208
    %v477 = vunpack.c.l.b16 %v209
    %v478 = vunpack.c.l.b16 %v210
    %v479 = vunpack.c.l.b16 %v211
    %v480 = vunpack.c.l.b16 %v212
    %v481 = vunpack.c.l.b16 %v213
    %v482 = vunpack.c.l.b16 %v214
    %v483 = vunpack.c.l.b16 %v215
    %v484 = vunpack.c.l.b16 %v216
    %v485 = vunpack.c.l.b16 %v217
    %v486 = vunpack.c.l.b16 %v218
    %v487 = vunpack.c.l.b16 %v219
    %v488 = vunpack.c.l.b16 %v220
    %v489 = vunpack.c.l.b16 %v221
    %v490 = vunpack.c.l.b16 %v222
    %v491 = vunpack.c.l.b16 %v223
    %v492 = vunpack.c.l.b16 %v224
    %v493 = vunpack.c.l.b16 %v225
    %v494 = vunpack.c.l.b16 %v226
    %v495 = vunpack.c.l.b16 %v227
    %v496 = vunpack.c.l.b16 %v228
    %v497 = vunpack.c.l.b16 %v229
    %v498 = vunpack.c.l.b16 %v230
    %v499 = vunpack.c.l.b16 %v231
    %v500 = vunpack.c.l.b16 %v232
    %v501 = vunpack.c.l.b16 %v233
    %v502 = vunpack.c.l.b16 %v234
    %v503 = vunpack.c.l.b16 %v235
    %v504 = vunpack.c.l.b16 %v236
    %v505 = vpack.c.b16 %v378, %v377
    %v506 = vpack.c.b16 %v380, %v379
    %v507 = vpack.c.b16 %v382, %v381
    %v508 = vpack.c.b16 %v384, %v383
    %v509 = vpack.c.b16 %v386, %v385
    %v510 = vpack.c.b16 %v388, %v387
    %v511 = vpack.c.b16 %v390, %v389
    %v512 = vpack.c.b16 %v392, %v391
    %v513 = vpack.c.b16 %v394, %v393
    %v514 = vpack.c.b16 %v396, %v395
    %v515 = vpack.c.b16 %v398, %v397
    %v516 = vpack.c.b16 %v400, %v399
    %v517 = vpack.c.b16 %v402, %v401
    %v518 = vpack.c.b16 %v404, %v403
    %v519 = vpack.c.b16 %v406, %v405
    %v520 = vpack.c.b16 %v408, %v407
    %v521 = vpack.c.b16 %v410, %v409
    %v522 = vpack.c.b16 %v412, %v411
    %v523 = vpack.c.b16 %v414, %v413
    %v524 = vpack.c.b16 %v416, %v415
    %v525 = vpack.c.b16 %v418, %v417
    %v526 = vpack.c.b16 %v420, %v419
    %v527 = vpack.c.b16 %v422, %v421
    %v528 = vpack.c.b16 %v424, %v423
    %v529 = vpack.c.b16 %v426, %v425
    %v530 = vpack.c.b16 %v428, %v427
    %v531 = vpack.c.b16 %v430, %v429
    %v532 = vpack.c.b16 %v432, %v431
    %v533 = vpack.c.b16 %v434, %v433
    %v534 = vpack.c.b16 %v436, %v435
    %v535 = vpack.c.b16 %v438, %v437
    %v536 = vpack.c.b16 %v440, %v439
    %v537 = vpack.c.b16 %v442, %v441
    %v538 = vpack.c.b16 %v444, %v443
    %v539 = vpack.c.b16 %v446, %v445
    %v540 = vpack.c.b16 %v448, %v447
    %v541 = vpack.c.b16 %v450, %v449
    %v542 = vpack.c.b16 %v452, %v451
    %v543 = vpack.c.b16 %v454, %v453
    %v544 = vpack.c.b16 %v456, %v455
    %v545 = vpack.c.b16 %v458, %v457
    %v546 = vpack.c.b16 %v460, %v459
    %v547 = vpack.c.b16 %v462, %v461
    %v548 = vpack.c.b16 %v464, %v463
    %v549 = vpack.c.b16 %v466, %v465
    %v550 = vpack.c.b16 %v468, %v467
    %v551 = vpack.c.b16 %v470, %v469
    %v552 = vpack.c.b16 %v472, %v471
    %v553 = vpack.c.b16 %v474, %v473
    %v554 = vpack.c.b16 %v476, %v475
    %v555 = vpack.c.b16 %v478, %v477
    %v556 = vpack.c.b16 %v480, %v479
    %v557 = vpack.c.b16 %v482, %v481
    %v558 = vpack.c.b16 %v484, %v483
    %v559 = vpack.c.b16 %v486, %v485
    %v560 = vpack.c.b16 %v488, %v487
    %v561 = vpack.c.b16 %v490, %v489
    %v562 = vpack.c.b16 %v492, %v491
    %v563 = vpack.c.b16 %v494, %v493
    %v564 = vpack.c.b16 %v496, %v495
    %v565 = vpack.c.b16 %v498, %v497
    %v566 = vpack.c.b16 %v500, %v499
    %v567 = vpack.c.b16 %v502, %v501
    %v568 = vpack.c.b16 %v504, %v503
    %633 = vmatpush.bf16.msra.mxu0 %v512
    %634 = vmatpush.bf16.msra.mxu0 %v511
    %635 = vmatpush.bf16.msra.mxu0 %v510
    %636 = vmatpush.bf16.msra.mxu0 %v509
    %637 = vmatpush.bf16.msra.mxu0 %v508
    %638 = vmatpush.bf16.msra.mxu0 %v507
    %639 = vmatpush.bf16.msra.mxu0 %v506
    %640 = vmatpush.bf16.msra.mxu0 %v505
    %641 = vmatmul.bf16.gmra.mxu0 %v238
    %v642 = vpop.f32.mrf.mxu0
    %v643 = vadd.f32 %v247, %v642
    %v644 = vpop.f32.mrf.mxu0
    %645 = vdwg.mxu0
    %646 = vmatpush.bf16.msra.mxu0 %v520
    %647 = vmatpush.bf16.msra.mxu0 %v519
    %648 = vmatpush.bf16.msra.mxu0 %v518
    %649 = vmatpush.bf16.msra.mxu0 %v517
    %650 = vmatpush.bf16.msra.mxu0 %v516
    %651 = vmatpush.bf16.msra.mxu0 %v515
    %652 = vmatpush.bf16.msra.mxu0 %v514
    %653 = vmatpush.bf16.msra.mxu0 %v513
    %654 = vmatmul.bf16.gmra.mxu0 %v239
    %v655 = vpop.f32.mrf.mxu0
    %v656 = vadd.f32 %v643, %v655
    %v657 = vpop.f32.mrf.mxu0
    %658 = vdwg.mxu0
    %659 = vmatpush.bf16.msra.mxu0 %v528
    %660 = vmatpush.bf16.msra.mxu0 %v527
    %661 = vmatpush.bf16.msra.mxu0 %v526
    %662 = vmatpush.bf16.msra.mxu0 %v525
    %663 = vmatpush.bf16.msra.mxu0 %v524
    %664 = vmatpush.bf16.msra.mxu0 %v523
    %665 = vmatpush.bf16.msra.mxu0 %v522
    %666 = vmatpush.bf16.msra.mxu0 %v521
    %667 = vmatmul.bf16.gmra.mxu0 %v240
    %v668 = vpop.f32.mrf.mxu0
    %v669 = vadd.f32 %v656, %v668
    %v670 = vpop.f32.mrf.mxu0
    %671 = vdwg.mxu0
    %672 = vmatpush.bf16.msra.mxu0 %v536
    %673 = vmatpush.bf16.msra.mxu0 %v535
    %674 = vmatpush.bf16.msra.mxu0 %v534
    %675 = vmatpush.bf16.msra.mxu0 %v533
    %676 = vmatpush.bf16.msra.mxu0 %v532
    %677 = vmatpush.bf16.msra.mxu0 %v531
    %678 = vmatpush.bf16.msra.mxu0 %v530
    %679 = vmatpush.bf16.msra.mxu0 %v529
    %680 = vmatmul.bf16.gmra.mxu0 %v241
    %v681 = vpop.f32.mrf.mxu0
    %v682 = vadd.f32 %v669, %v681
    %v683 = vpop.f32.mrf.mxu0
    %684 = vdwg.mxu0
    %685 = vmatpush.bf16.msra.mxu0 %v544
    %686 = vmatpush.bf16.msra.mxu0 %v543
    %687 = vmatpush.bf16.msra.mxu0 %v542
    %688 = vmatpush.bf16.msra.mxu0 %v541
    %689 = vmatpush.bf16.msra.mxu0 %v540
    %690 = vmatpush.bf16.msra.mxu0 %v539
    %691 = vmatpush.bf16.msra.mxu0 %v538
    %692 = vmatpush.bf16.msra.mxu0 %v537
    %693 = vmatmul.bf16.gmra.mxu0 %v242
    %v694 = vpop.f32.mrf.mxu0
    %v695 = vadd.f32 %v682, %v694
    %v696 = vpop.f32.mrf.mxu0
    %697 = vdwg.mxu0
    %698 = vmatpush.bf16.msra.mxu0 %v552
    %699 = vmatpush.bf16.msra.mxu0 %v551
    %700 = vmatpush.bf16.msra.mxu0 %v550
    %701 = vmatpush.bf16.msra.mxu0 %v549
    %702 = vmatpush.bf16.msra.mxu0 %v548
    %703 = vmatpush.bf16.msra.mxu0 %v547
    %704 = vmatpush.bf16.msra.mxu0 %v546
    %705 = vmatpush.bf16.msra.mxu0 %v545
    %706 = vmatmul.bf16.gmra.mxu0 %v243
    %v707 = vpop.f32.mrf.mxu0
    %v708 = vadd.f32 %v695, %v707
    %v709 = vpop.f32.mrf.mxu0
    %710 = vdwg.mxu0
    %711 = vmatpush.bf16.msra.mxu0 %v560
    %712 = vmatpush.bf16.msra.mxu0 %v559
    %713 = vmatpush.bf16.msra.mxu0 %v558
    %714 = vmatpush.bf16.msra.mxu0 %v557
    %715 = vmatpush.bf16.msra.mxu0 %v556
    %716 = vmatpush.bf16.msra.mxu0 %v555
    %717 = vmatpush.bf16.msra.mxu0 %v554
    %718 = vmatpush.bf16.msra.mxu0 %v553
    %719 = vmatmul.bf16.gmra.mxu0 %v244
    %v720 = vpop.f32.mrf.mxu0
    %v721 = vadd.f32 %v708, %v720
    %v722 = vpop.f32.mrf.mxu0
    %723 = vdwg.mxu0
    %724 = vmatpush.bf16.msra.mxu0 %v568
    %725 = vmatpush.bf16.msra.mxu0 %v567
    %726 = vmatpush.bf16.msra.mxu0 %v566
    %727 = vmatpush.bf16.msra.mxu0 %v565
    %728 = vmatpush.bf16.msra.mxu0 %v564
    %729 = vmatpush.bf16.msra.mxu0 %v563
    %730 = vmatpush.bf16.msra.mxu0 %v562
    %731 = vmatpush.bf16.msra.mxu0 %v561
    %732 = vmatmul.bf16.gmra.mxu0 %v245
    %v733 = vpop.f32.mrf.mxu0
    %v734 = vadd.f32 %v721, %v733
    %v735 = vpop.f32.mrf.mxu0
    %736 = vdwg.mxu0
    %v737 = vmax.f32 %v734, 0.0
    %v738 = vld [vmem:[#allocation7] sm:$0xf]
    %v739 = vld [vmem:[#allocation7 + $0x4] sm:$0xf]
    %v740 = vld [vmem:[#allocation7 + $0x8] sm:$0xf]
    %v741 = vld [vmem:[#allocation7 + $0xc] sm:$0xf]
    %v742 = vld [vmem:[#allocation7 + $0x10] sm:$0xf]
    %v743 = vld [vmem:[#allocation7 + $0x14] sm:$0xf]
    %v744 = vld [vmem:[#allocation7 + $0x18] sm:$0xf]
    %v745 = vld [vmem:[#allocation7 + $0x1c] sm:$0xf]
    %v746 = vld [vmem:[#allocation7 + $0x20] sm:$0xf]
    %v747 = vld [vmem:[#allocation7 + $0x24] sm:$0xf]
    %v748 = vld [vmem:[#allocation7 + $0x28] sm:$0xf]
    %v749 = vld [vmem:[#allocation7 + $0x2c] sm:$0xf]
    %v750 = vld [vmem:[#allocation7 + $0x30] sm:$0xf]
    %v751 = vld [vmem:[#allocation7 + $0x34] sm:$0xf]
    %v752 = vld [vmem:[#allocation7 + $0x38] sm:$0xf]
    %v753 = vld [vmem:[#allocation7 + $0x3c] sm:$0xf]
    %v754 = vld [vmem:[%s4] sm:$0x1]
    %v755 = vpack.c.bf16 %v737, %v737
    %v757 = vperm.slane %v754, 0
    %v775 = vunpack.c.l.b16 %v738
    %v776 = vunpack.c.l.b16 %v739
    %v777 = vunpack.c.l.b16 %v740
    %v778 = vunpack.c.l.b16 %v741
    %v779 = vunpack.c.l.b16 %v742
    %v780 = vunpack.c.l.b16 %v743
    %v781 = vunpack.c.l.b16 %v744
    %v782 = vunpack.c.l.b16 %v745
    %v783 = vunpack.c.l.b16 %v746
    %v784 = vunpack.c.l.b16 %v747
    %v785 = vunpack.c.l.b16 %v748
    %v786 = vunpack.c.l.b16 %v749
    %v787 = vunpack.c.l.b16 %v750
    %v788 = vunpack.c.l.b16 %v751
    %v789 = vunpack.c.l.b16 %v752
    %v790 = vunpack.c.l.b16 %v753
    %v791 = vpack.c.b16 %v776, %v775
    %v792 = vpack.c.b16 %v778, %v777
    %v793 = vpack.c.b16 %v780, %v779
    %v794 = vpack.c.b16 %v782, %v781
    %v795 = vpack.c.b16 %v784, %v783
    %v796 = vpack.c.b16 %v786, %v785
    %v797 = vpack.c.b16 %v788, %v787
    %v798 = vpack.c.b16 %v790, %v789
    %807 = vmatpush.bf16.msra.mxu0 %v798
    %808 = vmatpush.bf16.msra.mxu0 %v797
    %809 = vmatpush.bf16.msra.mxu0 %v796
    %810 = vmatpush.bf16.msra.mxu0 %v795
    %811 = vmatpush.bf16.msra.mxu0 %v794
    %812 = vmatpush.bf16.msra.mxu0 %v793
    %813 = vmatpush.bf16.msra.mxu0 %v792
    %814 = vmatpush.bf16.msra.mxu0 %v791
    %815 = vmatmul.bf16.gmra.mxu0 %v755
    %v816 = vpop.f32.mrf.mxu0
    %v817 = vadd.f32 %v757, %v816
    %v818 = vpop.f32.mrf.mxu0
    %819 = vdwg.mxu0
    %v820 = vmax.f32 %v817, 0.0
    %v821 = vld [vmem:[#allocation8] sm:$0xff]
    %v822 = vld [vmem:[#allocation8 + $0x8] sm:$0xff]
    %v823 = vld [vmem:[#allocation8 + $0x10] sm:$0xff]
    %v824 = vld [vmem:[#allocation8 + $0x18] sm:$0xff]
    %v825 = vld [vmem:[#allocation8 + $0x20] sm:$0xff]
    %v826 = vld [vmem:[#allocation8 + $0x28] sm:$0xff]
    %v827 = vld [vmem:[#allocation8 + $0x30] sm:$0xff]
    %v828 = vld [vmem:[#allocation8 + $0x38] sm:$0xff]
    %v829 = vld [vmem:[#allocation8 + $0x40] sm:$0xff]
    %v830 = vld [vmem:[#allocation8 + $0x48] sm:$0xff]
    %v831 = vld [vmem:[#allocation8 + $0x50] sm:$0xff]
    %v832 = vld [vmem:[#allocation8 + $0x58] sm:$0xff]
    %v833 = vld [vmem:[#allocation8 + $0x60] sm:$0xff]
    %v834 = vld [vmem:[#allocation8 + $0x68] sm:$0xff]
    %v835 = vld [vmem:[#allocation8 + $0x70] sm:$0xff]
    %v836 = vld [vmem:[#allocation8 + $0x78] sm:$0xff]
    %v837 = vld [vmem:[#allocation8 + $0x80] sm:$0xff]
    %v838 = vld [vmem:[#allocation8 + $0x88] sm:$0xff]
    %v839 = vld [vmem:[#allocation8 + $0x90] sm:$0xff]
    %v840 = vld [vmem:[#allocation8 + $0x98] sm:$0xff]
    %v841 = vld [vmem:[#allocation8 + $0xa0] sm:$0xff]
    %v842 = vld [vmem:[#allocation8 + $0xa8] sm:$0xff]
    %v843 = vld [vmem:[#allocation8 + $0xb0] sm:$0xff]
    %v844 = vld [vmem:[#allocation8 + $0xb8] sm:$0xff]
    %v845 = vld [vmem:[#allocation8 + $0xc0] sm:$0xff]
    %v846 = vld [vmem:[#allocation8 + $0xc8] sm:$0xff]
    %v847 = vld [vmem:[#allocation8 + $0xd0] sm:$0xff]
    %v848 = vld [vmem:[#allocation8 + $0xd8] sm:$0xff]
    %v849 = vld [vmem:[#allocation8 + $0xe0] sm:$0xff]
    %v850 = vld [vmem:[#allocation8 + $0xe8] sm:$0xff]
    %v851 = vld [vmem:[#allocation8 + $0xf0] sm:$0xff]
    %v852 = vld [vmem:[#allocation8 + $0xf8] sm:$0xff]
    %v853 = vld [vmem:[#allocation8 + $0x100] sm:$0xff]
    %v854 = vld [vmem:[#allocation8 + $0x108] sm:$0xff]
    %v855 = vld [vmem:[#allocation8 + $0x110] sm:$0xff]
    %v856 = vld [vmem:[#allocation8 + $0x118] sm:$0xff]
    %v857 = vld [vmem:[#allocation8 + $0x120] sm:$0xff]
    %v858 = vld [vmem:[#allocation8 + $0x128] sm:$0xff]
    %v859 = vld [vmem:[#allocation8 + $0x130] sm:$0xff]
    %v860 = vld [vmem:[#allocation8 + $0x138] sm:$0xff]
    %v861 = vld [vmem:[#allocation8 + $0x140] sm:$0xff]
    %v862 = vld [vmem:[#allocation8 + $0x148] sm:$0xff]
    %v863 = vld [vmem:[#allocation8 + $0x150] sm:$0xff]
    %v864 = vld [vmem:[#allocation8 + $0x158] sm:$0xff]
    %v865 = vld [vmem:[#allocation8 + $0x160] sm:$0xff]
    %v866 = vld [vmem:[#allocation8 + $0x168] sm:$0xff]
    %v867 = vld [vmem:[#allocation8 + $0x170] sm:$0xff]
    %v868 = vld [vmem:[#allocation8 + $0x178] sm:$0xff]
    %v869 = vld [vmem:[#allocation8 + $0x180] sm:$0xff]
    %v870 = vld [vmem:[#allocation8 + $0x188] sm:$0xff]
    %v871 = vld [vmem:[#allocation8 + $0x190] sm:$0xff]
    %v872 = vld [vmem:[#allocation8 + $0x198] sm:$0xff]
    %v873 = vld [vmem:[#allocation8 + $0x1a0] sm:$0xff]
    %v874 = vld [vmem:[#allocation8 + $0x1a8] sm:$0xff]
    %v875 = vld [vmem:[#allocation8 + $0x1b0] sm:$0xff]
    %v876 = vld [vmem:[#allocation8 + $0x1b8] sm:$0xff]
    %v877 = vld [vmem:[#allocation8 + $0x1c0] sm:$0xff]
    %v878 = vld [vmem:[#allocation8 + $0x1c8] sm:$0xff]
    %v879 = vld [vmem:[#allocation8 + $0x1d0] sm:$0xff]
    %v880 = vld [vmem:[#allocation8 + $0x1d8] sm:$0xff]
    %v881 = vld [vmem:[#allocation8 + $0x1e0] sm:$0xff]
    %v882 = vld [vmem:[#allocation8 + $0x1e8] sm:$0xff]
    %v883 = vld [vmem:[#allocation8 + $0x1f0] sm:$0xff]
    %v884 = vld [vmem:[#allocation8 + $0x1f8] sm:$0xff]
    %v885 = vld [vmem:[#allocation10] sm:$0xff]
    %v886 = vpack.c.bf16 %v820, %v820
    %v888 = vperm.slane %v885, 0
    %v889 = vperm.slane %v885, 1
    %v890 = vperm.slane %v885, 2
    %v891 = vperm.slane %v885, 3
    %v892 = vperm.slane %v885, 4
    %v893 = vperm.slane %v885, 5
    %v894 = vperm.slane %v885, 6
    %v895 = vperm.slane %v885, 7
    %v968 = vunpack.c.l.b16 %v821
    %v969 = vunpack.c.h.b16 %v821
    %v970 = vunpack.c.l.b16 %v822
    %v971 = vunpack.c.h.b16 %v822
    %v972 = vunpack.c.l.b16 %v823
    %v973 = vunpack.c.h.b16 %v823
    %v974 = vunpack.c.l.b16 %v824
    %v975 = vunpack.c.h.b16 %v824
    %v976 = vunpack.c.l.b16 %v825
    %v977 = vunpack.c.h.b16 %v825
    %v978 = vunpack.c.l.b16 %v826
    %v979 = vunpack.c.h.b16 %v826
    %v980 = vunpack.c.l.b16 %v827
    %v981 = vunpack.c.h.b16 %v827
    %v982 = vunpack.c.l.b16 %v828
    %v983 = vunpack.c.h.b16 %v828
    %v984 = vunpack.c.l.b16 %v829
    %v985 = vunpack.c.h.b16 %v829
    %v986 = vunpack.c.l.b16 %v830
    %v987 = vunpack.c.h.b16 %v830
    %v988 = vunpack.c.l.b16 %v831
    %v989 = vunpack.c.h.b16 %v831
    %v990 = vunpack.c.l.b16 %v832
    %v991 = vunpack.c.h.b16 %v832
    %v992 = vunpack.c.l.b16 %v833
    %v993 = vunpack.c.h.b16 %v833
    %v994 = vunpack.c.l.b16 %v834
    %v995 = vunpack.c.h.b16 %v834
    %v996 = vunpack.c.l.b16 %v835
    %v997 = vunpack.c.h.b16 %v835
    %v998 = vunpack.c.l.b16 %v836
    %v999 = vunpack.c.h.b16 %v836
    %v1000 = vunpack.c.l.b16 %v837
    %v1001 = vunpack.c.h.b16 %v837
    %v1002 = vunpack.c.l.b16 %v838
    %v1003 = vunpack.c.h.b16 %v838
    %v1004 = vunpack.c.l.b16 %v839
    %v1005 = vunpack.c.h.b16 %v839
    %v1006 = vunpack.c.l.b16 %v840
    %v1007 = vunpack.c.h.b16 %v840
    %v1008 = vunpack.c.l.b16 %v841
    %v1009 = vunpack.c.h.b16 %v841
    %v1010 = vunpack.c.l.b16 %v842
    %v1011 = vunpack.c.h.b16 %v842
    %v1012 = vunpack.c.l.b16 %v843
    %v1013 = vunpack.c.h.b16 %v843
    %v1014 = vunpack.c.l.b16 %v844
    %v1015 = vunpack.c.h.b16 %v844
    %v1016 = vunpack.c.l.b16 %v845
    %v1017 = vunpack.c.h.b16 %v845
    %v1018 = vunpack.c.l.b16 %v846
    %v1019 = vunpack.c.h.b16 %v846
    %v1020 = vunpack.c.l.b16 %v847
    %v1021 = vunpack.c.h.b16 %v847
    %v1022 = vunpack.c.l.b16 %v848
    %v1023 = vunpack.c.h.b16 %v848
    %v1024 = vunpack.c.l.b16 %v849
    %v1025 = vunpack.c.h.b16 %v849
    %v1026 = vunpack.c.l.b16 %v850
    %v1027 = vunpack.c.h.b16 %v850
    %v1028 = vunpack.c.l.b16 %v851
    %v1029 = vunpack.c.h.b16 %v851
    %v1030 = vunpack.c.l.b16 %v852
    %v1031 = vunpack.c.h.b16 %v852
    %v1032 = vunpack.c.l.b16 %v853
    %v1033 = vunpack.c.h.b16 %v853
    %v1034 = vunpack.c.l.b16 %v854
    %v1035 = vunpack.c.h.b16 %v854
    %v1036 = vunpack.c.l.b16 %v855
    %v1037 = vunpack.c.h.b16 %v855
    %v1038 = vunpack.c.l.b16 %v856
    %v1039 = vunpack.c.h.b16 %v856
    %v1040 = vunpack.c.l.b16 %v857
    %v1041 = vunpack.c.h.b16 %v857
    %v1042 = vunpack.c.l.b16 %v858
    %v1043 = vunpack.c.h.b16 %v858
    %v1044 = vunpack.c.l.b16 %v859
    %v1045 = vunpack.c.h.b16 %v859
    %v1046 = vunpack.c.l.b16 %v860
    %v1047 = vunpack.c.h.b16 %v860
    %v1048 = vunpack.c.l.b16 %v861
    %v1049 = vunpack.c.h.b16 %v861
    %v1050 = vunpack.c.l.b16 %v862
    %v1051 = vunpack.c.h.b16 %v862
    %v1052 = vunpack.c.l.b16 %v863
    %v1053 = vunpack.c.h.b16 %v863
    %v1054 = vunpack.c.l.b16 %v864
    %v1055 = vunpack.c.h.b16 %v864
    %v1056 = vunpack.c.l.b16 %v865
    %v1057 = vunpack.c.h.b16 %v865
    %v1058 = vunpack.c.l.b16 %v866
    %v1059 = vunpack.c.h.b16 %v866
    %v1060 = vunpack.c.l.b16 %v867
    %v1061 = vunpack.c.h.b16 %v867
    %v1062 = vunpack.c.l.b16 %v868
    %v1063 = vunpack.c.h.b16 %v868
    %v1064 = vunpack.c.l.b16 %v869
    %v1065 = vunpack.c.h.b16 %v869
    %v1066 = vunpack.c.l.b16 %v870
    %v1067 = vunpack.c.h.b16 %v870
    %v1068 = vunpack.c.l.b16 %v871
    %v1069 = vunpack.c.h.b16 %v871
    %v1070 = vunpack.c.l.b16 %v872
    %v1071 = vunpack.c.h.b16 %v872
    %v1072 = vunpack.c.l.b16 %v873
    %v1073 = vunpack.c.h.b16 %v873
    %v1074 = vunpack.c.l.b16 %v874
    %v1075 = vunpack.c.h.b16 %v874
    %v1076 = vunpack.c.l.b16 %v875
    %v1077 = vunpack.c.h.b16 %v875
    %v1078 = vunpack.c.l.b16 %v876
    %v1079 = vunpack.c.h.b16 %v876
    %v1080 = vunpack.c.l.b16 %v877
    %v1081 = vunpack.c.h.b16 %v877
    %v1082 = vunpack.c.l.b16 %v878
    %v1083 = vunpack.c.h.b16 %v878
    %v1084 = vunpack.c.l.b16 %v879
    %v1085 = vunpack.c.h.b16 %v879
    %v1086 = vunpack.c.l.b16 %v880
    %v1087 = vunpack.c.h.b16 %v880
    %v1088 = vunpack.c.l.b16 %v881
    %v1089 = vunpack.c.h.b16 %v881
    %v1090 = vunpack.c.l.b16 %v882
    %v1091 = vunpack.c.h.b16 %v882
    %v1092 = vunpack.c.l.b16 %v883
    %v1093 = vunpack.c.h.b16 %v883
    %v1094 = vunpack.c.l.b16 %v884
    %v1095 = vunpack.c.h.b16 %v884
    %v1096 = vpack.c.b16 %v976, %v968
    %v1097 = vpack.c.b16 %v977, %v969
    %v1098 = vpack.c.b16 %v978, %v970
    %v1099 = vpack.c.b16 %v979, %v971
    %v1100 = vpack.c.b16 %v980, %v972
    %v1101 = vpack.c.b16 %v981, %v973
    %v1102 = vpack.c.b16 %v982, %v974
    %v1103 = vpack.c.b16 %v983, %v975
    %v1104 = vpack.c.b16 %v992, %v984
    %v1105 = vpack.c.b16 %v993, %v985
    %v1106 = vpack.c.b16 %v994, %v986
    %v1107 = vpack.c.b16 %v995, %v987
    %v1108 = vpack.c.b16 %v996, %v988
    %v1109 = vpack.c.b16 %v997, %v989
    %v1110 = vpack.c.b16 %v998, %v990
    %v1111 = vpack.c.b16 %v999, %v991
    %v1112 = vpack.c.b16 %v1008, %v1000
    %v1113 = vpack.c.b16 %v1009, %v1001
    %v1114 = vpack.c.b16 %v1010, %v1002
    %v1115 = vpack.c.b16 %v1011, %v1003
    %v1116 = vpack.c.b16 %v1012, %v1004
    %v1117 = vpack.c.b16 %v1013, %v1005
    %v1118 = vpack.c.b16 %v1014, %v1006
    %v1119 = vpack.c.b16 %v1015, %v1007
    %v1120 = vpack.c.b16 %v1024, %v1016
    %v1121 = vpack.c.b16 %v1025, %v1017
    %v1122 = vpack.c.b16 %v1026, %v1018
    %v1123 = vpack.c.b16 %v1027, %v1019
    %v1124 = vpack.c.b16 %v1028, %v1020
    %v1125 = vpack.c.b16 %v1029, %v1021
    %v1126 = vpack.c.b16 %v1030, %v1022
    %v1127 = vpack.c.b16 %v1031, %v1023
    %v1128 = vpack.c.b16 %v1040, %v1032
    %v1129 = vpack.c.b16 %v1041, %v1033
    %v1130 = vpack.c.b16 %v1042, %v1034
    %v1131 = vpack.c.b16 %v1043, %v1035
    %v1132 = vpack.c.b16 %v1044, %v1036
    %v1133 = vpack.c.b16 %v1045, %v1037
    %v1134 = vpack.c.b16 %v1046, %v1038
    %v1135 = vpack.c.b16 %v1047, %v1039
    %v1136 = vpack.c.b16 %v1056, %v1048
    %v1137 = vpack.c.b16 %v1057, %v1049
    %v1138 = vpack.c.b16 %v1058, %v1050
    %v1139 = vpack.c.b16 %v1059, %v1051
    %v1140 = vpack.c.b16 %v1060, %v1052
    %v1141 = vpack.c.b16 %v1061, %v1053
    %v1142 = vpack.c.b16 %v1062, %v1054
    %v1143 = vpack.c.b16 %v1063, %v1055
    %v1144 = vpack.c.b16 %v1072, %v1064
    %v1145 = vpack.c.b16 %v1073, %v1065
    %v1146 = vpack.c.b16 %v1074, %v1066
    %v1147 = vpack.c.b16 %v1075, %v1067
    %v1148 = vpack.c.b16 %v1076, %v1068
    %v1149 = vpack.c.b16 %v1077, %v1069
    %v1150 = vpack.c.b16 %v1078, %v1070
    %v1151 = vpack.c.b16 %v1079, %v1071
    %v1152 = vpack.c.b16 %v1088, %v1080
    %v1153 = vpack.c.b16 %v1089, %v1081
    %v1154 = vpack.c.b16 %v1090, %v1082
    %v1155 = vpack.c.b16 %v1091, %v1083
    %v1156 = vpack.c.b16 %v1092, %v1084
    %v1157 = vpack.c.b16 %v1093, %v1085
    %v1158 = vpack.c.b16 %v1094, %v1086
    %v1159 = vpack.c.b16 %v1095, %v1087
    %1224 = vmatpush.bf16.msra.mxu0 %v1152
    %1225 = vmatpush.bf16.msra.mxu0 %v1144
    %1226 = vmatpush.bf16.msra.mxu0 %v1136
    %1227 = vmatpush.bf16.msra.mxu0 %v1128
    %1228 = vmatpush.bf16.msra.mxu0 %v1120
    %1229 = vmatpush.bf16.msra.mxu0 %v1112
    %1230 = vmatpush.bf16.msra.mxu0 %v1104
    %1231 = vmatpush.bf16.msra.mxu0 %v1096
    %1232 = vmatmul.bf16.gmra.mxu0 %v886
    %v1233 = vpop.f32.mrf.mxu0
    %v1234 = vadd.f32 %v888, %v1233
    %v1235 = vpop.f32.mrf.mxu0
    %1236 = vdwg.mxu0
    %1237 = vmatpush.bf16.msra.mxu0 %v1153
    %1238 = vmatpush.bf16.msra.mxu0 %v1145
    %1239 = vmatpush.bf16.msra.mxu0 %v1137
    %1240 = vmatpush.bf16.msra.mxu0 %v1129
    %1241 = vmatpush.bf16.msra.mxu0 %v1121
    %1242 = vmatpush.bf16.msra.mxu0 %v1113
    %1243 = vmatpush.bf16.msra.mxu0 %v1105
    %1244 = vmatpush.bf16.msra.mxu0 %v1097
    %1245 = vmatmul.bf16.gmra.mxu0 %v886
    %v1246 = vpop.f32.mrf.mxu0
    %v1247 = vadd.f32 %v889, %v1246
    %v1248 = vpop.f32.mrf.mxu0
    %1249 = vdwg.mxu0
    %1250 = vmatpush.bf16.msra.mxu0 %v1154
    %1251 = vmatpush.bf16.msra.mxu0 %v1146
    %1252 = vmatpush.bf16.msra.mxu0 %v1138
    %1253 = vmatpush.bf16.msra.mxu0 %v1130
    %1254 = vmatpush.bf16.msra.mxu0 %v1122
    %1255 = vmatpush.bf16.msra.mxu0 %v1114
    %1256 = vmatpush.bf16.msra.mxu0 %v1106
    %1257 = vmatpush.bf16.msra.mxu0 %v1098
    %1258 = vmatmul.bf16.gmra.mxu0 %v886
    %v1259 = vpop.f32.mrf.mxu0
    %v1260 = vadd.f32 %v890, %v1259
    %v1261 = vpop.f32.mrf.mxu0
    %1262 = vdwg.mxu0
    %1263 = vmatpush.bf16.msra.mxu0 %v1155
    %1264 = vmatpush.bf16.msra.mxu0 %v1147
    %1265 = vmatpush.bf16.msra.mxu0 %v1139
    %1266 = vmatpush.bf16.msra.mxu0 %v1131
    %1267 = vmatpush.bf16.msra.mxu0 %v1123
    %1268 = vmatpush.bf16.msra.mxu0 %v1115
    %1269 = vmatpush.bf16.msra.mxu0 %v1107
    %1270 = vmatpush.bf16.msra.mxu0 %v1099
    %1271 = vmatmul.bf16.gmra.mxu0 %v886
    %v1272 = vpop.f32.mrf.mxu0
    %v1273 = vadd.f32 %v891, %v1272
    %v1274 = vpop.f32.mrf.mxu0
    %1275 = vdwg.mxu0
    %1276 = vmatpush.bf16.msra.mxu0 %v1156
    %1277 = vmatpush.bf16.msra.mxu0 %v1148
    %1278 = vmatpush.bf16.msra.mxu0 %v1140
    %1279 = vmatpush.bf16.msra.mxu0 %v1132
    %1280 = vmatpush.bf16.msra.mxu0 %v1124
    %1281 = vmatpush.bf16.msra.mxu0 %v1116
    %1282 = vmatpush.bf16.msra.mxu0 %v1108
    %1283 = vmatpush.bf16.msra.mxu0 %v1100
    %1284 = vmatmul.bf16.gmra.mxu0 %v886
    %v1285 = vpop.f32.mrf.mxu0
    %v1286 = vadd.f32 %v892, %v1285
    %v1287 = vpop.f32.mrf.mxu0
    %1288 = vdwg.mxu0
    %1289 = vmatpush.bf16.msra.mxu0 %v1157
    %1290 = vmatpush.bf16.msra.mxu0 %v1149
    %1291 = vmatpush.bf16.msra.mxu0 %v1141
    %1292 = vmatpush.bf16.msra.mxu0 %v1133
    %1293 = vmatpush.bf16.msra.mxu0 %v1125
    %1294 = vmatpush.bf16.msra.mxu0 %v1117
    %1295 = vmatpush.bf16.msra.mxu0 %v1109
    %1296 = vmatpush.bf16.msra.mxu0 %v1101
    %1297 = vmatmul.bf16.gmra.mxu0 %v886
    %v1298 = vpop.f32.mrf.mxu0
    %v1299 = vadd.f32 %v893, %v1298
    %v1300 = vpop.f32.mrf.mxu0
    %1301 = vdwg.mxu0
    %1302 = vmatpush.bf16.msra.mxu0 %v1158
    %1303 = vmatpush.bf16.msra.mxu0 %v1150
    %1304 = vmatpush.bf16.msra.mxu0 %v1142
    %1305 = vmatpush.bf16.msra.mxu0 %v1134
    %1306 = vmatpush.bf16.msra.mxu0 %v1126
    %1307 = vmatpush.bf16.msra.mxu0 %v1118
    %1308 = vmatpush.bf16.msra.mxu0 %v1110
    %1309 = vmatpush.bf16.msra.mxu0 %v1102
    %1310 = vmatmul.bf16.gmra.mxu0 %v886
    %v1311 = vpop.f32.mrf.mxu0
    %v1312 = vadd.f32 %v894, %v1311
    %v1313 = vpop.f32.mrf.mxu0
    %1314 = vdwg.mxu0
    %1315 = vmatpush.bf16.msra.mxu0 %v1159
    %1316 = vmatpush.bf16.msra.mxu0 %v1151
    %1317 = vmatpush.bf16.msra.mxu0 %v1143
    %1318 = vmatpush.bf16.msra.mxu0 %v1135
    %1319 = vmatpush.bf16.msra.mxu0 %v1127
    %1320 = vmatpush.bf16.msra.mxu0 %v1119
    %1321 = vmatpush.bf16.msra.mxu0 %v1111
    %1322 = vmatpush.bf16.msra.mxu0 %v1103
    %1323 = vmatmul.bf16.gmra.mxu0 %v886
    %v1324 = vpop.f32.mrf.mxu0
    %v1325 = vadd.f32 %v895, %v1324
    %v1326 = vpop.f32.mrf.mxu0
    %1327 = vdwg.mxu0
    %1328 = vst [vmem:[#allocation11] sm:$0xff] %v1234
    %1329 = vst [vmem:[#allocation11 + $0x8] sm:$0xff] %v1247
    %1330 = vst [vmem:[#allocation11 + $0x10] sm:$0xff] %v1260
    %1331 = vst [vmem:[#allocation11 + $0x18] sm:$0xff] %v1273
    %1332 = vst [vmem:[#allocation11 + $0x20] sm:$0xff] %v1286
    %1333 = vst [vmem:[#allocation11 + $0x28] sm:$0xff] %v1299
    %1334 = vst [vmem:[#allocation11 + $0x30] sm:$0xff] %v1312
    %1335 = vst [vmem:[#allocation11 + $0x38] sm:$0xff] %v1325
    // Predicated region
    $region50: #{tpu_custom_call.1} parent=1 // pred_check
      _
    $region51: #{tpu_custom_call.1} parent=1 // pred_check_branch
      %1337 = sbr.rel (0) target = $region53
    $region52: #{tpu_custom_call.1} parent=1 // pred_region
      %1339 = vsyncadd [#allocation4], 0
      %s1341 = sshll.u32 [#allocation11], 4
      %s1342 = int_to_ptr.vmem [resolvable:$true] %s1341
      %s1343 = sshll.u32 %s7, 4
      %s1344 = int_to_ptr.hbm [resolvable:$true] %s1343
      %1346 = dma.vmem_to_hbm [thread:$0]  %s1342, 1024, %s1344, [#allocation4]
    $region53: #{tpu_custom_call.1} parent=1 // pred_fallthru
      _
    // Predicated region
    $region54: #{tpu_custom_call.1} parent=1 // pred_check
      _
    $region55: #{tpu_custom_call.1} parent=1 // pred_check_branch
      %1348 = sbr.rel (0) target = $region57
    $region56: #{tpu_custom_call.1} parent=1 // pred_region
      %1350 = dma.done [#allocation4], 1024
    $region57: #{tpu_custom_call.1} parent=1 // pred_fallthru
      _
    %1351 = vsyncpa [#allocation3], 1
    %1352 = vsyncpa [#allocation6], 1
    %1353 = vsyncpa [#allocation9], 1
    %1354 = vsyncpa [#allocation4], 1

</llo_original>
